<compile_context>
chip_gen: v5e
topology: v5e:2x2
jax: 0.10.0
libtpu: 0.0.40
codegen_flags: <defaults>
</compile_context>

<pallas_src>
import functools
from typing import NamedTuple

import jax
import jax.numpy as jnp
from jax.experimental import pallas as pl
from jax.experimental.pallas import tpu as pltpu

_MiB = 1024 * 1024


def _round_up(x, m):
    return (x + m - 1) // m * m


def _tpu_vmem_capacity_bytes():
    """Physical VMEM per core; conservative fallback if the query fails."""
    try:
        info = pltpu.get_tpu_info()
        cap = getattr(info, "vmem_capacity_bytes", None)
        if cap:
            return int(cap)
    except Exception:
        pass
    return 64 * _MiB  # v7x per-TensorCore size; safe lower bound.


def _is_v5e():
    try:
        kind = jax.devices()[0].device_kind.lower()
        return ("v5 lite" in kind) or ("v5e" in kind) or ("v5litepod" in kind)
    except Exception:
        return False


# --------------------------------------------------------------------------
# Kernel body
# --------------------------------------------------------------------------
def _qwen2_mlp_kernel(x_ref, wgu_ref, wd_ref, o_ref, *scratch,
                      clamp, tf, nk, ew_f32):
    """One (row-tile i, intermediate-tile k) grid step.

    x_ref  : (tm, Din)            activation rows for this row tile
    wgu_ref: (Din, 2*tf)          interleaved [gate_k | up_k] weight tile
    wd_ref : (tf, Dout_pad)       down_proj weight tile
    o_ref  : (tm, Dout_pad)       output tile (written on the last k step)
    scratch: ((tm, Dout_pad) f32 accumulator,) when nk > 1
    """
    x = x_ref[...]
    # Fused gate/up projection: one MXU pass, f32 accumulation.
    gu = jnp.dot(x, wgu_ref[...], preferred_element_type=jnp.float32)
    if not ew_f32:
        # bf16 elementwise (v6e/v7x VPU + EUP support bf16); halves the
        # (tm, 2*tf) intermediate footprint.  proj goes to the MXU as bf16
        # anyway, so accuracy is unchanged.
        gu = gu.astype(x.dtype)

    gate = gu[:, :tf]
    up = gu[:, tf:]
    if clamp:
        gate = jnp.clip(gate, -100.0, 100.0)
    gate = gate * jax.nn.sigmoid(gate)        # SiLU (EUP sigmoid)
    proj = gate * up
    if clamp:
        proj = jnp.clip(proj, -1000.0, 1000.0)

    # Partial down-projection for this intermediate tile, f32 accumulate.
    partial = jnp.dot(proj.astype(wd_ref.dtype), wd_ref[...],
                      preferred_element_type=jnp.float32)

    if nk == 1:
        o_ref[...] = partial.astype(o_ref.dtype)
    else:
        acc_ref = scratch[0]
        k = pl.program_id(1)

        @pl.when(k == 0)
        def _first():                      # skip zero-init: write directly
            acc_ref[...] = partial

        @pl.when(jnp.logical_and(k > 0, k < nk - 1))
        def _mid():
            acc_ref[...] += partial

        @pl.when(k == nk - 1)
        def _last():                       # fuse final add into the output store
            o_ref[...] = (acc_ref[...] + partial).astype(o_ref.dtype)


# --------------------------------------------------------------------------
# Load-time planning + weight packing (run ONCE per parameter set)
# --------------------------------------------------------------------------
class Qwen2MLPPlan(NamedTuple):
    din: int
    dff: int
    dout: int
    dff_pad: int
    dout_pad: int
    tf: int
    nk: int
    tm: int
    sub: int
    vmem_limit: int
    ew_f32: bool


def plan_qwen2_mlp(din, dff, dout, dtype, *, tm_target=None, tf_target=1024):
    """Pick (tm, tf) tiles and the VMEM limit for this chip generation."""
    itemsize = jnp.dtype(dtype).itemsize
    sub = max(8, 32 // itemsize)            # 8 for f32, 16 for bf16, 32 for 8-bit
    vmem_cap = _tpu_vmem_capacity_bytes()
    is_v5e = _is_v5e()

    if tm_target is None:
        # Roofline-driven: tm sets arithmetic intensity per weight byte.
        # ~1024 (v6e-class, 128 MiB VMEM), ~512 (v7x, 64 MiB/TC), ~256 (v5e).
        tm_target = 256 if is_v5e else (512 if vmem_cap <= 96 * _MiB else 1024)

    ew_f32 = is_v5e or (jnp.dtype(dtype) != jnp.dtype(jnp.bfloat16))

    dout_pad = _round_up(dout, 128)
    tm = _round_up(tm_target, sub)
    tf = min(_round_up(tf_target, 128), _round_up(dff, 128))

    # Usable VMEM: leave headroom for compiler scratch / spill.
    budget = max(16 * _MiB, min(int(vmem_cap * 0.78), vmem_cap - 12 * _MiB))

    def working_set(tm_, tf_):
        dbuf = 2 * itemsize * (tm_ * din + din * 2 * tf_
                               + tf_ * dout_pad + tm_ * dout_pad)
        acc = 4 * tm_ * dout_pad if _round_up(dff, tf_) // tf_ > 1 else 0
        inter = 4 * tm_ * 2 * tf_ + (4 if ew_f32 else itemsize) * tm_ * tf_
        return dbuf + acc + inter

    # Shrink tf first (no change to HBM weight traffic), then tm.
    while working_set(tm, tf) > budget:
        if tf > 128:
            tf = max(128, _round_up(tf // 2, 128))
        elif tm > sub:
            tm = max(sub, _round_up(tm // 2, sub))
        else:
            break

    dff_pad = _round_up(dff, tf)
    nk = dff_pad // tf
    vmem_limit = int(max(32 * _MiB,
                         min(vmem_cap - 12 * _MiB,
                             working_set(tm, tf) + 16 * _MiB)))

    return Qwen2MLPPlan(din=din, dff=dff, dout=dout, dff_pad=dff_pad,
                        dout_pad=dout_pad, tf=tf, nk=nk, tm=tm, sub=sub,
                        vmem_limit=vmem_limit, ew_f32=ew_f32)


def pack_qwen2_mlp_weights(gate_w, up_w, down_w, plan):
    """Pack nn.Linear-layout weights into the kernel layout (load time only).

    gate_w, up_w : (Dff, Din)   nn.Linear weight layout
    down_w       : (Dout, Dff)
    Returns wgu (Din, 2*dff_pad) with per-k-tile [gate_k | up_k] interleave,
    and wd (dff_pad, dout_pad).
    """
    dff, din = gate_w.shape
    dout = down_w.shape[0]

    wg_t = gate_w.T            # (Din, Dff)
    wu_t = up_w.T              # (Din, Dff)
    wd_t = down_w.T            # (Dff, Dout)

    if plan.dff_pad != dff:
        pad = plan.dff_pad - dff
        wg_t = jnp.pad(wg_t, ((0, 0), (0, pad)))
        wu_t = jnp.pad(wu_t, ((0, 0), (0, pad)))
        wd_t = jnp.pad(wd_t, ((0, pad), (0, 0)))
    if plan.dout_pad != dout:
        wd_t = jnp.pad(wd_t, ((0, 0), (0, plan.dout_pad - dout)))

    wgu = jnp.stack(
        [wg_t.reshape(din, plan.nk, plan.tf),
         wu_t.reshape(din, plan.nk, plan.tf)], axis=2
    ).reshape(din, 2 * plan.dff_pad)
    return wgu, wd_t


# --------------------------------------------------------------------------
# Per-call path
# --------------------------------------------------------------------------
def qwen2_mlp_apply(hidden_state, wgu, wd, plan, *, clamp=False):
    """Forward pass matching Qwen2MLP.forward using pre-packed weights."""
    batch, seq, din = hidden_state.shape
    assert din == plan.din
    dtype = hidden_state.dtype
    itemsize = jnp.dtype(dtype).itemsize

    m = batch * seq
    tm_eff = min(plan.tm, _round_up(m, plan.sub))
    m_pad = _round_up(m, tm_eff)
    n_row_tiles = m_pad // tm_eff
    nk = plan.nk
    tf = plan.tf
    dout_pad = plan.dout_pad

    x2d = hidden_state.reshape(m, din)
    if m_pad != m:
        x2d = jnp.pad(x2d, ((0, m_pad - m), (0, 0)))

    kernel = functools.partial(_qwen2_mlp_kernel, clamp=clamp, tf=tf,
                               nk=nk, ew_f32=plan.ew_f32)

    # Weights are streamed from HBM once per row tile.
    flops = 2 * m_pad * (din * 2 * plan.dff_pad + plan.dff_pad * dout_pad)
    weight_bytes = (wgu.size * jnp.dtype(wgu.dtype).itemsize
                    + wd.size * jnp.dtype(wd.dtype).itemsize)
    bytes_accessed = (m_pad * din * itemsize
                      + weight_bytes * n_row_tiles
                      + m_pad * dout_pad * itemsize)
    cost = pl.CostEstimate(flops=flops, transcendentals=m_pad * plan.dff_pad,
                           bytes_accessed=bytes_accessed)

    scratch = ([] if nk == 1
               else [pltpu.VMEM((tm_eff, dout_pad), jnp.float32)])

    out2d = pl.pallas_call(
        kernel,
        out_shape=jax.ShapeDtypeStruct((m_pad, dout_pad), dtype),
        grid_spec=pltpu.PrefetchScalarGridSpec(
            num_scalar_prefetch=0,
            grid=(n_row_tiles, nk),
            in_specs=[
                pl.BlockSpec((tm_eff, din), lambda i, k: (i, 0)),
                pl.BlockSpec((din, 2 * tf), lambda i, k: (0, k)),
                pl.BlockSpec((tf, dout_pad), lambda i, k: (k, 0)),
            ],
            out_specs=pl.BlockSpec((tm_eff, dout_pad), lambda i, k: (i, 0)),
            scratch_shapes=scratch,
        ),
        compiler_params=pltpu.CompilerParams(
            dimension_semantics=("parallel", "arbitrary"),
            vmem_limit_bytes=plan.vmem_limit),
        cost_estimate=cost,
    )(x2d, wgu, wd)

    return out2d[:m, :plan.dout].reshape(batch, seq, plan.dout)


def qwen2_mlp(hidden_state, gate_w, up_w, down_w, *, clamp=False,
              tm_target=None, tf_target=1024):
    """Convenience one-shot wrapper (plans + packs per call).

    For production, call plan_qwen2_mlp / pack_qwen2_mlp_weights ONCE at
    parameter-load time and use qwen2_mlp_apply on the hot path.
    """
    din = hidden_state.shape[-1]
    dff = gate_w.shape[0]
    dout = down_w.shape[0]
    plan = plan_qwen2_mlp(din, dff, dout, hidden_state.dtype,
                          tm_target=tm_target, tf_target=tf_target)
    wgu, wd = pack_qwen2_mlp_weights(gate_w, up_w, down_w, plan)
    return qwen2_mlp_apply(hidden_state, wgu, wd, plan, clamp=clamp)


# --------------------------------------------------------------------------
# Reference + demo
# --------------------------------------------------------------------------
def _reference(hidden_state, gate_w, up_w, down_w, clamp=False):
    x = hidden_state.astype(jnp.float32)
    gate = x @ gate_w.T.astype(jnp.float32)
    if clamp:
        gate = jnp.clip(gate, -100.0, 100.0)
    gate = gate * jax.nn.sigmoid(gate)
    up = x @ up_w.T.astype(jnp.float32)
    proj = gate * up
    if clamp:
        proj = jnp.clip(proj, -1000.0, 1000.0)
    return proj @ down_w.T.astype(jnp.float32)


if __name__ == "__main__":
    # Module config: Qwen2MLP(input_size=32, output_size=32) -> intermediate=64.
    input_size = 32
    output_size = 32
    intermediate_size = input_size * 2   # intermediate_ratio=None
    batch, seq = 2, 7                    # M = 14: exercises the row-padding path

    key = jax.random.PRNGKey(0)
    k_x, k_g, k_u, k_d = jax.random.split(key, 4)

    dt = jnp.bfloat16    # bf16 MXU operands; f32 accumulation inside the kernel
    hidden_state = jax.random.normal(
        k_x, (batch, seq, input_size), jnp.float32).astype(dt)
    # nn.Linear(in, out, bias=False).weight has shape (out, in)
    gate_w = (jax.random.normal(
        k_g, (intermediate_size, input_size), jnp.float32) * 0.05).astype(dt)
    up_w = (jax.random.normal(
        k_u, (intermediate_size, input_size), jnp.float32) * 0.05).astype(dt)
    down_w = (jax.random.normal(
        k_d, (output_size, intermediate_size), jnp.float32) * 0.05).astype(dt)

    # Load-time: plan tiles for this chip and pack weights ONCE.
    plan = plan_qwen2_mlp(input_size, intermediate_size, output_size, dt)
    wgu, wd = jax.block_until_ready(
        pack_qwen2_mlp_weights(gate_w, up_w, down_w, plan))

    for clamp in (False, True):
        out = qwen2_mlp_apply(hidden_state, wgu, wd, plan, clamp=clamp)
        out = jax.block_until_ready(out)
        assert out.shape == (batch, seq, output_size)
        assert out.dtype == dt
        ref = _reference(hidden_state, gate_w, up_w, down_w, clamp=clamp)
        err = float(jnp.max(jnp.abs(out.astype(jnp.float32) - ref)))
        assert err < 8e-3, f"mismatch vs reference (clamp={clamp}): {err}"

    print("KERNEL_OK")
</pallas_src>

<mosaic_0001>
module attributes {stable_mosaic.version = 11 : i64} {
  func.func @_qwen2_mlp_kernel(%arg0: i32, %arg1: i32, %arg2: memref<16x32xbf16, #tpu.memory_space<vmem>>, %arg3: memref<32x256xbf16, #tpu.memory_space<vmem>>, %arg4: memref<128x128xbf16, #tpu.memory_space<vmem>>, %arg5: memref<16x128xbf16, #tpu.memory_space<vmem>>) attributes {dimension_semantics = [#tpu.dimension_semantics<parallel>, #tpu.dimension_semantics<arbitrary>], iteration_bounds = array<i64: 1, 1>, scalar_prefetch = 0 : i64, scratch_operands = 0 : i64, tpu.core_type = #tpu.core_type<tc>, window_params = [{transform_indices = @transform_0, window_bounds = array<i64: 16, 32>}, {transform_indices = @transform_1, window_bounds = array<i64: 32, 256>}, {transform_indices = @transform_2, window_bounds = array<i64: 128, 128>}, {transform_indices = @transform_3, window_bounds = array<i64: 16, 128>}]} {
    %c0 = arith.constant 0 : index
    %c0_0 = arith.constant 0 : index
    %0 = vector.load %arg2[%c0, %c0_0] : memref<16x32xbf16, #tpu.memory_space<vmem>>, vector<16x32xbf16>
    %c0_1 = arith.constant 0 : index
    %c0_2 = arith.constant 0 : index
    %1 = vector.load %arg3[%c0_1, %c0_2] : memref<32x256xbf16, #tpu.memory_space<vmem>>, vector<32x256xbf16>
    %cst = arith.constant dense<0.000000e+00> : vector<16x256xf32>
    %2 = tpu.matmul %0, %1, %cst {dimension_numbers = #tpu.dot_dimension_numbers<[1], [0], [0], [1], [0, 0, 1, 1], [], []>} : vector<16x32xbf16>, vector<32x256xbf16>, vector<16x256xf32> -> vector<16x256xf32>
    %3 = arith.truncf %2 : vector<16x256xf32> to vector<16x256xbf16>
    %4 = vector.extract_strided_slice %3 {offsets = [0, 0], sizes = [16, 128], strides = [1, 1]} : vector<16x256xbf16> to vector<16x128xbf16>
    %5 = vector.extract_strided_slice %3 {offsets = [0, 128], sizes = [16, 128], strides = [1, 1]} : vector<16x256xbf16> to vector<16x128xbf16>
    %6 = arith.negf %4 : vector<16x128xbf16>
    %7 = math.exp %6 : vector<16x128xbf16>
    %cst_3 = arith.constant 1.000000e+00 : bf16
    %8 = vector.broadcast %cst_3 : bf16 to vector<16x128xbf16>
    %9 = arith.addf %8, %7 : vector<16x128xbf16>
    %10 = arith.divf %8, %9 : vector<16x128xbf16>
    %11 = arith.mulf %4, %10 : vector<16x128xbf16>
    %12 = arith.mulf %11, %5 : vector<16x128xbf16>
    %c0_4 = arith.constant 0 : index
    %c0_5 = arith.constant 0 : index
    %13 = vector.load %arg4[%c0_4, %c0_5] : memref<128x128xbf16, #tpu.memory_space<vmem>>, vector<128x128xbf16>
    %cst_6 = arith.constant dense<0.000000e+00> : vector<16x128xf32>
    %14 = tpu.matmul %12, %13, %cst_6 {dimension_numbers = #tpu.dot_dimension_numbers<[1], [0], [0], [1], [0, 0, 1, 1], [], []>} : vector<16x128xbf16>, vector<128x128xbf16>, vector<16x128xf32> -> vector<16x128xf32>
    %15 = arith.truncf %14 : vector<16x128xf32> to vector<16x128xbf16>
    %c0_7 = arith.constant 0 : index
    %c0_8 = arith.constant 0 : index
    %16 = vector.load %arg5[%c0_7, %c0_8] : memref<16x128xbf16, #tpu.memory_space<vmem>>, vector<16x128xbf16>
    tpu.vector_store %arg5[%c0_7, %c0_8], %15 {strides = array<i32>} : memref<16x128xbf16, #tpu.memory_space<vmem>>, vector<16x128xbf16>,
    return
  }
  func.func @transform_0(%arg0: i32, %arg1: i32) -> (i32, i32) {
    %c0_i32 = arith.constant 0 : i32
    %c0_i32_0 = arith.constant 0 : i32
    return %arg0, %c0_i32 : i32, i32
  }
  func.func @transform_1(%arg0: i32, %arg1: i32) -> (i32, i32) {
    %c0_i32 = arith.constant 0 : i32
    %c0_i32_0 = arith.constant 0 : i32
    return %c0_i32, %arg1 : i32, i32
  }
  func.func @transform_2(%arg0: i32, %arg1: i32) -> (i32, i32) {
    %c0_i32 = arith.constant 0 : i32
    %c0_i32_0 = arith.constant 0 : i32
    return %arg1, %c0_i32 : i32, i32
  }
  func.func @transform_3(%arg0: i32, %arg1: i32) -> (i32, i32) {
    %c0_i32 = arith.constant 0 : i32
    %c0_i32_0 = arith.constant 0 : i32
    return %arg0, %c0_i32 : i32, i32
  }
}

</mosaic_0001>

<llo_original>
// kernel: tpu_custom_call.1
$region0: #{tpu_custom_call.1}
  #allocation0 [shape = 'u32[]', space=smem, size = 0x4, offset = 0x4, fixed_abs, tag = 'smem constant byte address 0x4 - core index']
  #allocation1 [shape = 'u32[72,128]{1,0:T(1,128)}', space=vmem, size = 0x9000, scoped, tag = 'internal scratch']
  %s0 = inlined_call_operand.hbm [shape: bf16[16,32], index: 0, kind: input, shape index: {}]
  %s1 = inlined_call_operand.hbm [shape: bf16[32,256], index: 1, kind: input, shape index: {}]
  %s2 = inlined_call_operand.hbm [shape: bf16[128,128], index: 2, kind: input, shape index: {}]
  %s3 = inlined_call_operand.hbm [shape: bf16[16,128], index: 3, kind: output, shape index: {}]
  %s4 = sld [smem:[#allocation0]]
  $region34: #{tpu_custom_call.1} parent=0
    _
  %s6 = ssub.s32 1, %s4
  %s7 = scalar_select 0, %s6, %s4
  $region1: #{tpu_custom_call.1} parent=0
    #allocation2 [shape = 'u8[4096]{0}', space=vmem, size = 0x1000, scoped, tag = 'input window, operand 0, single buffered']
    #allocation3 [shape = 's32[1]{0}', space=sflag, size = 0x4, scoped, tag = 'scoped memory for tpu_custom_call.1']
    #allocation4 [shape = 's32[1]{0}', space=sflag, size = 0x4, scoped, tag = 'scoped memory for tpu_custom_call.1']
    #allocation5 [shape = 'u8[16384]{0}', space=vmem, size = 0x4000, scoped, tag = 'input window, operand 1, single buffered']
    #allocation6 [shape = 's32[1]{0}', space=sflag, size = 0x4, scoped, tag = 'scoped memory for tpu_custom_call.1']
    #allocation7 [shape = 'u8[32768]{0}', space=vmem, size = 0x8000, scoped, tag = 'input window, operand 2, single buffered']
    #allocation8 [shape = 'u8[4096]{0}', space=vmem, size = 0x1000, scoped, tag = 'output window, operand 0, single buffered']
    %8 = vsyncpa [#allocation3], 0
    %9 = vsyncpa [#allocation6], 0
    %10 = vsyncpa [#allocation4], 0
    // Predicated region
    $region2: #{tpu_custom_call.1} parent=1 // pred_check
      _
    $region3: #{tpu_custom_call.1} parent=1 // pred_check_branch
      %12 = sbr.rel (0) target = $region5
    $region4: #{tpu_custom_call.1} parent=1 // pred_region
      %14 = vsyncadd [#allocation3], 0
      %s15 = sshll.u32 %s0, 4
      %s16 = int_to_ptr.hbm [resolvable:$true] %s15
      %s17 = sshll.u32 [#allocation2], 4
      %s18 = int_to_ptr.vmem [resolvable:$true] %s17
      %23 = dma.hbm_to_vmem [thread:$0]  %s16, 128, %s18, [#allocation3], 64, 64, 4
    $region5: #{tpu_custom_call.1} parent=1 // pred_fallthru
      _
    // Predicated region
    $region6: #{tpu_custom_call.1} parent=1 // pred_check
      _
    $region7: #{tpu_custom_call.1} parent=1 // pred_check_branch
      %25 = sbr.rel (0) target = $region9
    $region8: #{tpu_custom_call.1} parent=1 // pred_region
      %27 = vsyncadd [#allocation6], 0
      %s28 = sshll.u32 %s1, 4
      %s29 = int_to_ptr.hbm [resolvable:$true] %s28
      %s30 = sshll.u32 [#allocation5], 4
      %s31 = int_to_ptr.vmem [resolvable:$true] %s30
      %36 = dma.hbm_to_vmem [thread:$0]  %s29, 512, %s31, [#allocation6], 128, 128, 8
    $region9: #{tpu_custom_call.1} parent=1 // pred_fallthru
      _
    // Predicated region
    $region10: #{tpu_custom_call.1} parent=1 // pred_check
      _
    $region11: #{tpu_custom_call.1} parent=1 // pred_check_branch
      %38 = sbr.rel (0) target = $region13
    $region12: #{tpu_custom_call.1} parent=1 // pred_region
      %40 = vsyncadd [#allocation6], 0
      %s41 = sshll.u32 %s2, 4
      %s42 = int_to_ptr.hbm [resolvable:$true] %s41
      %s43 = sshll.u32 [#allocation7], 4
      %s44 = int_to_ptr.vmem [resolvable:$true] %s43
      %49 = dma.hbm_to_vmem [thread:$0]  %s42, 1024, %s44, [#allocation6], 64, 64, 4
    $region13: #{tpu_custom_call.1} parent=1 // pred_fallthru
      _
    // Predicated region
    $region14: #{tpu_custom_call.1} parent=1 // pred_check
      _
    $region15: #{tpu_custom_call.1} parent=1 // pred_check_branch
      %51 = sbr.rel (0) target = $region17
    $region16: #{tpu_custom_call.1} parent=1 // pred_region
      %53 = dma.done [#allocation3], 128
    $region17: #{tpu_custom_call.1} parent=1 // pred_fallthru
      _
    // Predicated region
    $region18: #{tpu_custom_call.1} parent=1 // pred_check
      _
    $region19: #{tpu_custom_call.1} parent=1 // pred_check_branch
      %55 = sbr.rel (0) target = $region21
    $region20: #{tpu_custom_call.1} parent=1 // pred_region
      %57 = dma.done [#allocation6], 512
    $region21: #{tpu_custom_call.1} parent=1 // pred_fallthru
      _
    // Predicated region
    $region22: #{tpu_custom_call.1} parent=1 // pred_check
      _
    $region23: #{tpu_custom_call.1} parent=1 // pred_check_branch
      %59 = sbr.rel (0) target = $region25
    $region24: #{tpu_custom_call.1} parent=1 // pred_region
      %61 = dma.done [#allocation6], 1024
    $region25: #{tpu_custom_call.1} parent=1 // pred_fallthru
      _
    %v64 = vld [vmem:[#allocation2] sm:$0xf]
    %v65 = vld [vmem:[#allocation2 + $0x4] sm:$0xf]
    %v66 = vld [vmem:[#allocation5] sm:$0xff]
    %v67 = vld [vmem:[#allocation5 + $0x8] sm:$0xff]
    %v68 = vld [vmem:[#allocation5 + $0x10] sm:$0xff]
    %v69 = vld [vmem:[#allocation5 + $0x18] sm:$0xff]
    %v72 = vunpack.c.l.b16 %v64
    %v73 = vunpack.c.l.b16 %v65
    %v74 = vpack.c.b16 %v73, %v72
    %v79 = vunpack.c.l.b16 %v66
    %v80 = vunpack.c.h.b16 %v66
    %v81 = vunpack.c.l.b16 %v67
    %v82 = vunpack.c.h.b16 %v67
    %v83 = vunpack.c.l.b16 %v68
    %v84 = vunpack.c.h.b16 %v68
    %v85 = vunpack.c.l.b16 %v69
    %v86 = vunpack.c.h.b16 %v69
    %v87 = vpack.c.b16 %v81, %v79
    %v88 = vpack.c.b16 %v82, %v80
    %v89 = vpack.c.b16 %v85, %v83
    %v90 = vpack.c.b16 %v86, %v84
    %vm95 = vcmask 261120
    %v97 = vsel %vm95, %v74, 0
    %99 = vmatpush.bf16.msra.mxu0 0
    %100 = vmatpush.bf16.msra.mxu0 0
    %101 = vmatpush.bf16.msra.mxu0 0
    %102 = vmatpush.bf16.msra.mxu0 0
    %103 = vmatpush.bf16.msra.mxu0 0
    %104 = vmatpush.bf16.msra.mxu0 0
    %105 = vmatpush.bf16.msra.mxu0 %v89
    %106 = vmatpush.bf16.msra.mxu0 %v87
    %107 = vmatmul.bf16.gmra.mxu0 %v97
    %v108 = vpop.f32.mrf.mxu0
    %v109 = vadd.f32 0.0, %v108
    %v110 = vpop.f32.mrf.mxu0
    %v111 = vadd.f32 0.0, %v110
    %112 = vdwg.mxu0
    %113 = vmatpush.bf16.msra.mxu0 0
    %114 = vmatpush.bf16.msra.mxu0 0
    %115 = vmatpush.bf16.msra.mxu0 0
    %116 = vmatpush.bf16.msra.mxu0 0
    %117 = vmatpush.bf16.msra.mxu0 0
    %118 = vmatpush.bf16.msra.mxu0 0
    %119 = vmatpush.bf16.msra.mxu0 %v90
    %120 = vmatpush.bf16.msra.mxu0 %v88
    %121 = vmatmul.bf16.gmra.mxu0 %v97
    %v122 = vpop.f32.mrf.mxu0
    %v123 = vadd.f32 0.0, %v122
    %v124 = vpop.f32.mrf.mxu0
    %v125 = vadd.f32 0.0, %v124
    %126 = vdwg.mxu0
    %v127 = vpack.c.bf16 %v123, %v109
    %v128 = vpack.c.bf16 %v125, %v111
    %v129 = vxor.u32 %v127, 2147516416
    %v130 = vxor.u32 %v128, 2147516416
    %v131 = vunpack.c.l.bf16 %v129
    %v132 = vunpack.c.l.bf16 %v130
    %v133 = vmul.f32 %v131, 1.442695
    %v134 = vpow.pop %v133
    %v135 = vmul.f32 %v132, 1.442695
    %v136 = vpow.pop %v135
    %v137 = vpack.c.bf16 %v134, %v134
    %v138 = vpack.c.bf16 %v136, %v136
    %v139 = vunpack.c.l.bf16 %v137
    %v140 = vunpack.c.l.bf16 %v138
    %v141 = vadd.f32 %v139, 1.0
    %v142 = vadd.f32 %v140, 1.0
    %v143 = vpack.c.bf16 %v141, %v141
    %v144 = vpack.c.bf16 %v142, %v142
    %v145 = vunpack.c.h.bf16 1065369472
    %v146 = vunpack.c.l.bf16 1065369472
    %v147 = vunpack.c.h.bf16 %v143
    %v148 = vunpack.c.l.bf16 %v143
    %v149 = vrcp.pop %v147
    %v150 = vmul.f32 %v145, %v149
    %v151 = vrcp.pop %v148
    %v152 = vmul.f32 %v146, %v151
    %v153 = vpack.c.bf16 %v150, %v152
    %v154 = vunpack.c.h.bf16 %v144
    %v155 = vunpack.c.l.bf16 %v144
    %v156 = vrcp.pop %v154
    %v157 = vmul.f32 %v145, %v156
    %v158 = vrcp.pop %v155
    %v159 = vmul.f32 %v146, %v158
    %v160 = vpack.c.bf16 %v157, %v159
    %v161 = vunpack.c.l.bf16 %v127
    %v162 = vunpack.c.l.bf16 %v128
    %v163 = vunpack.c.l.bf16 %v153
    %v164 = vunpack.c.l.bf16 %v160
    %v165 = vmul.f32 %v161, %v163
    %v166 = vmul.f32 %v162, %v164
    %v167 = vpack.c.bf16 %v165, %v165
    %v168 = vpack.c.bf16 %v166, %v166
    %v169 = vunpack.c.l.bf16 %v167
    %v170 = vunpack.c.l.bf16 %v168
    %v173 = vrot.slane %v127, 4
    %v174 = vrot.slane %v128, 4
    %v177 = vunpack.c.l.bf16 %v173
    %v178 = vunpack.c.l.bf16 %v174
    %v179 = vmul.f32 %v169, %v177
    %v180 = vmul.f32 %v170, %v178
    %v181 = vpack.c.bf16 %v180, %v179
    %v182 = vld [vmem:[#allocation7] sm:$0xf]
    %v183 = vld [vmem:[#allocation7 + $0x4] sm:$0xf]
    %v184 = vld [vmem:[#allocation7 + $0x8] sm:$0xf]
    %v185 = vld [vmem:[#allocation7 + $0xc] sm:$0xf]
    %v186 = vld [vmem:[#allocation7 + $0x10] sm:$0xf]
    %v187 = vld [vmem:[#allocation7 + $0x14] sm:$0xf]
    %v188 = vld [vmem:[#allocation7 + $0x18] sm:$0xf]
    %v189 = vld [vmem:[#allocation7 + $0x1c] sm:$0xf]
    %v190 = vld [vmem:[#allocation7 + $0x20] sm:$0xf]
    %v191 = vld [vmem:[#allocation7 + $0x24] sm:$0xf]
    %v192 = vld [vmem:[#allocation7 + $0x28] sm:$0xf]
    %v193 = vld [vmem:[#allocation7 + $0x2c] sm:$0xf]
    %v194 = vld [vmem:[#allocation7 + $0x30] sm:$0xf]
    %v195 = vld [vmem:[#allocation7 + $0x34] sm:$0xf]
    %v196 = vld [vmem:[#allocation7 + $0x38] sm:$0xf]
    %v197 = vld [vmem:[#allocation7 + $0x3c] sm:$0xf]
    %v214 = vunpack.c.l.b16 %v182
    %v215 = vunpack.c.l.b16 %v183
    %v216 = vunpack.c.l.b16 %v184
    %v217 = vunpack.c.l.b16 %v185
    %v218 = vunpack.c.l.b16 %v186
    %v219 = vunpack.c.l.b16 %v187
    %v220 = vunpack.c.l.b16 %v188
    %v221 = vunpack.c.l.b16 %v189
    %v222 = vunpack.c.l.b16 %v190
    %v223 = vunpack.c.l.b16 %v191
    %v224 = vunpack.c.l.b16 %v192
    %v225 = vunpack.c.l.b16 %v193
    %v226 = vunpack.c.l.b16 %v194
    %v227 = vunpack.c.l.b16 %v195
    %v228 = vunpack.c.l.b16 %v196
    %v229 = vunpack.c.l.b16 %v197
    %v230 = vpack.c.b16 %v215, %v214
    %v231 = vpack.c.b16 %v217, %v216
    %v232 = vpack.c.b16 %v219, %v218
    %v233 = vpack.c.b16 %v221, %v220
    %v234 = vpack.c.b16 %v223, %v222
    %v235 = vpack.c.b16 %v225, %v224
    %v236 = vpack.c.b16 %v227, %v226
    %v237 = vpack.c.b16 %v229, %v228
    %246 = vmatpush.bf16.msra.mxu0 %v237
    %247 = vmatpush.bf16.msra.mxu0 %v236
    %248 = vmatpush.bf16.msra.mxu0 %v235
    %249 = vmatpush.bf16.msra.mxu0 %v234
    %250 = vmatpush.bf16.msra.mxu0 %v233
    %251 = vmatpush.bf16.msra.mxu0 %v232
    %252 = vmatpush.bf16.msra.mxu0 %v231
    %253 = vmatpush.bf16.msra.mxu0 %v230
    %254 = vmatmul.bf16.gmra.mxu0 %v181
    %v255 = vpop.f32.mrf.mxu0
    %v256 = vadd.f32 0.0, %v255
    %v257 = vpop.f32.mrf.mxu0
    %v258 = vadd.f32 0.0, %v257
    %259 = vdwg.mxu0
    %v260 = vpack.c.bf16 %v256, %v256
    %v261 = vpack.c.bf16 %v258, %v258
    %262 = vst [vmem:[#allocation8] sm:$0xf] %v260
    %263 = vst [vmem:[#allocation8 + $0x4] sm:$0xf] %v261
    // Predicated region
    $region26: #{tpu_custom_call.1} parent=1 // pred_check
      _
    $region27: #{tpu_custom_call.1} parent=1 // pred_check_branch
      %265 = sbr.rel (0) target = $region29
    $region28: #{tpu_custom_call.1} parent=1 // pred_region
      %267 = vsyncadd [#allocation4], 0
      %s268 = sshll.u32 [#allocation8], 4
      %s269 = int_to_ptr.vmem [resolvable:$true] %s268
      %s270 = sshll.u32 %s3, 4
      %s271 = int_to_ptr.hbm [resolvable:$true] %s270
      %276 = dma.vmem_to_hbm [thread:$0]  %s269, 128, %s271, [#allocation4], 64, 64, 4
    $region29: #{tpu_custom_call.1} parent=1 // pred_fallthru
      _
    // Predicated region
    $region30: #{tpu_custom_call.1} parent=1 // pred_check
      _
    $region31: #{tpu_custom_call.1} parent=1 // pred_check_branch
      %278 = sbr.rel (0) target = $region33
    $region32: #{tpu_custom_call.1} parent=1 // pred_region
      %280 = dma.done [#allocation4], 128
    $region33: #{tpu_custom_call.1} parent=1 // pred_fallthru
      _
    %281 = vsyncpa [#allocation3], 1
    %282 = vsyncpa [#allocation6], 1
    %283 = vsyncpa [#allocation4], 1

</llo_original>
